<compile_context>
chip_gen: v7x
topology: tpu7x:2x2x1
jax: 0.10.0
libtpu: 0.0.40
codegen_flags: <defaults>
</compile_context>

<pallas_src>
import jax
import jax.numpy as jnp
from jax.experimental import pallas as pl
from jax.experimental.pallas import tpu as pltpu


def _round_up(x, m):
    return ((x + m - 1) // m) * m


def hidden_gate_kernel(h_ref, x_ref, hs_ref, hi_ref,
                       w1_ref, w2_ref, w3_ref, w4_ref, b_ref, o_ref):
    # Four MXU contractions accumulated in f32 vregs: identical total K work to
    # a single K=6H chain, but no concatenated activation slab in HBM.
    acc = jnp.dot(h_ref[...], w1_ref[...], preferred_element_type=jnp.float32)
    acc += jnp.dot(x_ref[...], w2_ref[...], preferred_element_type=jnp.float32)
    acc += jnp.dot(hs_ref[...], w3_ref[...], preferred_element_type=jnp.float32)
    acc += jnp.dot(hi_ref[...], w4_ref[...], preferred_element_type=jnp.float32)
    # Fused epilogue: bias + sigmoid (EUP exp/recip sits in a free VLIW slot).
    o_ref[...] = jax.nn.sigmoid(acc + b_ref[...]).astype(o_ref.dtype)


def prepare_hidden_gate_params(w, b, *, compute_dtype=jnp.bfloat16):
    """One-time parameter prep (call at init, NOT on the per-step hot path).

    w: (H, 6H) PyTorch nn.Linear layout; b: (H,).
    Returns the weight pre-transposed to (6H, Hp), split into the four concat
    segments [h | x | h_slot | h_intent], zero-padded on the output axis to a
    lane-dense Hp = round_up(H, 128), and stored in `compute_dtype`
    (bf16 default; accumulation in the kernel is always f32).
    """
    H, K = w.shape
    assert K == 6 * H, "nn.Linear(hidden_size * 6, hidden_size) layout expected"
    Hp = _round_up(max(H, 128), 128)

    w_t = jnp.asarray(w, jnp.float32).T                      # (6H, H)
    if Hp != H:
        w_t = jnp.pad(w_t, ((0, 0), (0, Hp - H)))            # dead cols are zero
    w_t = w_t.astype(compute_dtype)

    b_pad = jnp.zeros((1, Hp), jnp.float32).at[0, :H].set(jnp.asarray(b, jnp.float32))

    return dict(
        w1=w_t[0:H],            # vs h        (H,  Hp)
        w2=w_t[H:4 * H],        # vs x        (3H, Hp)
        w3=w_t[4 * H:5 * H],    # vs h_slot   (H,  Hp)
        w4=w_t[5 * H:6 * H],    # vs h_intent (H,  Hp)
        b=b_pad,                # (1, Hp), f32
        hidden_size=H,
    )


def _vmem_capacity_bytes():
    try:
        return int(pltpu.get_tpu_info().vmem_capacity_bytes)
    except Exception:
        return 64 * 1024 * 1024          # conservative (v7x-sized) fallback


def _choose_tiles(B, H, Hp, act_itemsize, w_itemsize, out_itemsize):
    cap = _vmem_capacity_bytes()
    budget = int(cap * 0.45)             # resident-bytes target incl. double buffering
    K = 6 * H

    # Output-lane tile: a multiple of 128; shrink only if the resident,
    # double-buffered weight slab would eat more than half the budget.
    tn = 128
    for cand in (Hp, 4096, 2048, 1024, 512, 256, 128):
        if cand <= Hp and 2 * K * cand * w_itemsize <= budget // 2:
            tn = cand
            break

    # Batch tile: large to amortize the ~0.35us/grid-step overhead and weight
    # re-reads, but >= 2 tiles for B >= 16 so the "parallel" axis can shard
    # across TensorCores (v7x megacore). Tiny/odd batches use the full-extent
    # escape hatch of the (8,128) rule.
    if B < 16 or B % 8 != 0:
        bm = B
    else:
        bm = min(512, _round_up(pl.cdiv(B, 2), 8))

    def resident(bm_, tn_):
        act = 2 * bm_ * K * act_itemsize
        wgt = 2 * K * tn_ * w_itemsize
        out = 2 * bm_ * tn_ * out_itemsize
        bias = 2 * tn_ * 4
        return act + wgt + out + bias

    while bm > 8 and resident(bm, tn) > budget:
        bm = max(8, _round_up(bm // 2, 8))

    vmem_limit = min(int(cap * 0.9), max(resident(bm, tn) + (2 << 20), 16 << 20))
    return bm, tn, vmem_limit


def hidden_gate(h, x, h_slot, h_intent, params, *, out_dtype=None):
    """HiddenGate forward: sigmoid(Linear_{6H->H}(concat([h,x,h_slot,h_intent])))."""
    w1, w2, w3, w4, bias = params["w1"], params["w2"], params["w3"], params["w4"], params["b"]
    H = params["hidden_size"]
    Hp = bias.shape[1]
    B = h.shape[0]
    assert h.shape == (B, H) and h_slot.shape == (B, H) and h_intent.shape == (B, H)
    assert x.shape == (B, 3 * H)

    out_dtype = out_dtype or h.dtype
    cdt = w1.dtype
    h, x, h_slot, h_intent = (a if a.dtype == cdt else a.astype(cdt)
                              for a in (h, x, h_slot, h_intent))

    bm, tn, vmem_limit = _choose_tiles(
        B, H, Hp,
        jnp.dtype(cdt).itemsize, jnp.dtype(cdt).itemsize,
        jnp.dtype(out_dtype).itemsize)
    grid = (pl.cdiv(B, bm), pl.cdiv(Hp, tn))

    out = pl.pallas_call(
        hidden_gate_kernel,
        out_shape=jax.ShapeDtypeStruct((B, Hp), out_dtype),
        grid_spec=pltpu.PrefetchScalarGridSpec(
            num_scalar_prefetch=0,
            grid=grid,
            in_specs=[
                pl.BlockSpec((bm, H), lambda i, j: (i, 0)),       # h
                pl.BlockSpec((bm, 3 * H), lambda i, j: (i, 0)),   # x
                pl.BlockSpec((bm, H), lambda i, j: (i, 0)),       # h_slot
                pl.BlockSpec((bm, H), lambda i, j: (i, 0)),       # h_intent
                pl.BlockSpec((H, tn), lambda i, j: (0, j)),       # w1
                pl.BlockSpec((3 * H, tn), lambda i, j: (0, j)),   # w2
                pl.BlockSpec((H, tn), lambda i, j: (0, j)),       # w3
                pl.BlockSpec((H, tn), lambda i, j: (0, j)),       # w4
                pl.BlockSpec((1, tn), lambda i, j: (0, j)),       # bias (f32)
            ],
            out_specs=pl.BlockSpec((bm, tn), lambda i, j: (i, j)),
        ),
        compiler_params=pltpu.CompilerParams(
            dimension_semantics=("parallel", "parallel"),
            vmem_limit_bytes=vmem_limit,
        ),
    )(h, x, h_slot, h_intent, w1, w2, w3, w4, bias)

    return out[:, :H] if Hp != H else out


if __name__ == "__main__":
    B = 2
    H = 32            # hidden_size
    IN = 6 * H        # linear in_features

    key = jax.random.PRNGKey(0)
    k_h, k_x, k_hs, k_hi, k_w, k_b = jax.random.split(key, 6)

    h = jax.random.normal(k_h, (B, H), dtype=jnp.float32)
    x = jax.random.normal(k_x, (B, 3 * H), dtype=jnp.float32)      # concat -> 6H
    h_slot = jax.random.normal(k_hs, (B, H), dtype=jnp.float32)
    h_intent = jax.random.normal(k_hi, (B, H), dtype=jnp.float32)

    # Deterministic nn.Linear-style init: U(-1/sqrt(fan_in), 1/sqrt(fan_in)).
    bound = 1.0 / jnp.sqrt(jnp.float32(IN))
    w = jax.random.uniform(k_w, (H, IN), minval=-bound, maxval=bound,
                           dtype=jnp.float32)
    b = jax.random.uniform(k_b, (H,), minval=-bound, maxval=bound,
                           dtype=jnp.float32)

    # Pure-JAX reference (matches the PyTorch forward).
    ref = jax.nn.sigmoid(
        jnp.concatenate([h, x, h_slot, h_intent], axis=-1) @ w.T + b)

    # f32 stored weights: tight check of kernel structure / padding / slicing.
    params_f32 = prepare_hidden_gate_params(w, b, compute_dtype=jnp.float32)
    out_f32 = jax.block_until_ready(hidden_gate(h, x, h_slot, h_intent, params_f32))
    assert out_f32.shape == (B, H)
    assert jnp.allclose(out_f32, ref, atol=1e-5, rtol=1e-5)

    # bf16 stored weights (production default): MXU-native, half the DMA bytes.
    params_bf16 = prepare_hidden_gate_params(w, b)      # compute_dtype=bf16
    out_bf16 = jax.block_until_ready(hidden_gate(h, x, h_slot, h_intent, params_bf16))
    assert out_bf16.shape == (B, H)
    assert jnp.allclose(out_bf16, ref, atol=2e-2, rtol=2e-2)

    print("KERNEL_OK")
</pallas_src>

<mosaic_0001>
module attributes {stable_mosaic.version = 11 : i64} {
  func.func @hidden_gate_kernel(%arg0: i32, %arg1: i32, %arg2: memref<2x32xf32, #tpu.memory_space<vmem>>, %arg3: memref<2x96xf32, #tpu.memory_space<vmem>>, %arg4: memref<2x32xf32, #tpu.memory_space<vmem>>, %arg5: memref<2x32xf32, #tpu.memory_space<vmem>>, %arg6: memref<32x128xf32, #tpu.memory_space<vmem>>, %arg7: memref<96x128xf32, #tpu.memory_space<vmem>>, %arg8: memref<32x128xf32, #tpu.memory_space<vmem>>, %arg9: memref<32x128xf32, #tpu.memory_space<vmem>>, %arg10: memref<1x128xf32, #tpu.memory_space<vmem>>, %arg11: memref<2x128xf32, #tpu.memory_space<vmem>>) attributes {dimension_semantics = [#tpu.dimension_semantics<parallel>, #tpu.dimension_semantics<parallel>], iteration_bounds = array<i64: 1, 1>, scalar_prefetch = 0 : i64, scratch_operands = 0 : i64, tpu.core_type = #tpu.core_type<tc>, window_params = [{transform_indices = @transform_0, window_bounds = array<i64: 2, 32>}, {transform_indices = @transform_1, window_bounds = array<i64: 2, 96>}, {transform_indices = @transform_2, window_bounds = array<i64: 2, 32>}, {transform_indices = @transform_3, window_bounds = array<i64: 2, 32>}, {transform_indices = @transform_4, window_bounds = array<i64: 32, 128>}, {transform_indices = @transform_5, window_bounds = array<i64: 96, 128>}, {transform_indices = @transform_6, window_bounds = array<i64: 32, 128>}, {transform_indices = @transform_7, window_bounds = array<i64: 32, 128>}, {transform_indices = @transform_8, window_bounds = array<i64: 1, 128>}, {transform_indices = @transform_9, window_bounds = array<i64: 2, 128>}]} {
    %c0 = arith.constant 0 : index
    %c0_0 = arith.constant 0 : index
    %0 = vector.load %arg2[%c0, %c0_0] : memref<2x32xf32, #tpu.memory_space<vmem>>, vector<2x32xf32>
    %c0_1 = arith.constant 0 : index
    %c0_2 = arith.constant 0 : index
    %1 = vector.load %arg6[%c0_1, %c0_2] : memref<32x128xf32, #tpu.memory_space<vmem>>, vector<32x128xf32>
    %cst = arith.constant dense<0.000000e+00> : vector<2x128xf32>
    %2 = tpu.matmul %0, %1, %cst {dimension_numbers = #tpu.dot_dimension_numbers<[1], [0], [0], [1], [0, 0, 1, 1], [], []>} : vector<2x32xf32>, vector<32x128xf32>, vector<2x128xf32> -> vector<2x128xf32>
    %c0_3 = arith.constant 0 : index
    %c0_4 = arith.constant 0 : index
    %3 = vector.load %arg3[%c0_3, %c0_4] : memref<2x96xf32, #tpu.memory_space<vmem>>, vector<2x96xf32>
    %c0_5 = arith.constant 0 : index
    %c0_6 = arith.constant 0 : index
    %4 = vector.load %arg7[%c0_5, %c0_6] : memref<96x128xf32, #tpu.memory_space<vmem>>, vector<96x128xf32>
    %cst_7 = arith.constant dense<0.000000e+00> : vector<2x128xf32>
    %5 = tpu.matmul %3, %4, %cst_7 {dimension_numbers = #tpu.dot_dimension_numbers<[1], [0], [0], [1], [0, 0, 1, 1], [], []>} : vector<2x96xf32>, vector<96x128xf32>, vector<2x128xf32> -> vector<2x128xf32>
    %6 = arith.addf %2, %5 : vector<2x128xf32>
    %c0_8 = arith.constant 0 : index
    %c0_9 = arith.constant 0 : index
    %7 = vector.load %arg4[%c0_8, %c0_9] : memref<2x32xf32, #tpu.memory_space<vmem>>, vector<2x32xf32>
    %c0_10 = arith.constant 0 : index
    %c0_11 = arith.constant 0 : index
    %8 = vector.load %arg8[%c0_10, %c0_11] : memref<32x128xf32, #tpu.memory_space<vmem>>, vector<32x128xf32>
    %cst_12 = arith.constant dense<0.000000e+00> : vector<2x128xf32>
    %9 = tpu.matmul %7, %8, %cst_12 {dimension_numbers = #tpu.dot_dimension_numbers<[1], [0], [0], [1], [0, 0, 1, 1], [], []>} : vector<2x32xf32>, vector<32x128xf32>, vector<2x128xf32> -> vector<2x128xf32>
    %10 = arith.addf %6, %9 : vector<2x128xf32>
    %c0_13 = arith.constant 0 : index
    %c0_14 = arith.constant 0 : index
    %11 = vector.load %arg5[%c0_13, %c0_14] : memref<2x32xf32, #tpu.memory_space<vmem>>, vector<2x32xf32>
    %c0_15 = arith.constant 0 : index
    %c0_16 = arith.constant 0 : index
    %12 = vector.load %arg9[%c0_15, %c0_16] : memref<32x128xf32, #tpu.memory_space<vmem>>, vector<32x128xf32>
    %cst_17 = arith.constant dense<0.000000e+00> : vector<2x128xf32>
    %13 = tpu.matmul %11, %12, %cst_17 {dimension_numbers = #tpu.dot_dimension_numbers<[1], [0], [0], [1], [0, 0, 1, 1], [], []>} : vector<2x32xf32>, vector<32x128xf32>, vector<2x128xf32> -> vector<2x128xf32>
    %14 = arith.addf %10, %13 : vector<2x128xf32>
    %c0_18 = arith.constant 0 : index
    %c0_19 = arith.constant 0 : index
    %15 = vector.load %arg10[%c0_18, %c0_19] : memref<1x128xf32, #tpu.memory_space<vmem>>, vector<1x128xf32>
    %16 = vector.broadcast %15 : vector<1x128xf32> to vector<2x128xf32>
    %17 = arith.addf %14, %16 : vector<2x128xf32>
    %18 = arith.negf %17 : vector<2x128xf32>
    %19 = math.exp %18 : vector<2x128xf32>
    %cst_20 = arith.constant 1.000000e+00 : f32
    %20 = vector.broadcast %cst_20 : f32 to vector<2x128xf32>
    %21 = arith.addf %20, %19 : vector<2x128xf32>
    %22 = arith.divf %20, %21 : vector<2x128xf32>
    %c0_21 = arith.constant 0 : index
    %c0_22 = arith.constant 0 : index
    %23 = vector.load %arg11[%c0_21, %c0_22] : memref<2x128xf32, #tpu.memory_space<vmem>>, vector<2x128xf32>
    tpu.vector_store %arg11[%c0_21, %c0_22], %22 {strides = array<i32>} : memref<2x128xf32, #tpu.memory_space<vmem>>, vector<2x128xf32>,
    return
  }
  func.func @transform_0(%arg0: i32, %arg1: i32) -> (i32, i32) {
    %c0_i32 = arith.constant 0 : i32
    %c0_i32_0 = arith.constant 0 : i32
    return %arg0, %c0_i32 : i32, i32
  }
  func.func @transform_1(%arg0: i32, %arg1: i32) -> (i32, i32) {
    %c0_i32 = arith.constant 0 : i32
    %c0_i32_0 = arith.constant 0 : i32
    return %arg0, %c0_i32 : i32, i32
  }
  func.func @transform_2(%arg0: i32, %arg1: i32) -> (i32, i32) {
    %c0_i32 = arith.constant 0 : i32
    %c0_i32_0 = arith.constant 0 : i32
    return %arg0, %c0_i32 : i32, i32
  }
  func.func @transform_3(%arg0: i32, %arg1: i32) -> (i32, i32) {
    %c0_i32 = arith.constant 0 : i32
    %c0_i32_0 = arith.constant 0 : i32
    return %arg0, %c0_i32 : i32, i32
  }
  func.func @transform_4(%arg0: i32, %arg1: i32) -> (i32, i32) {
    %c0_i32 = arith.constant 0 : i32
    %c0_i32_0 = arith.constant 0 : i32
    return %c0_i32, %arg1 : i32, i32
  }
  func.func @transform_5(%arg0: i32, %arg1: i32) -> (i32, i32) {
    %c0_i32 = arith.constant 0 : i32
    %c0_i32_0 = arith.constant 0 : i32
    return %c0_i32, %arg1 : i32, i32
  }
  func.func @transform_6(%arg0: i32, %arg1: i32) -> (i32, i32) {
    %c0_i32 = arith.constant 0 : i32
    %c0_i32_0 = arith.constant 0 : i32
    return %c0_i32, %arg1 : i32, i32
  }
  func.func @transform_7(%arg0: i32, %arg1: i32) -> (i32, i32) {
    %c0_i32 = arith.constant 0 : i32
    %c0_i32_0 = arith.constant 0 : i32
    return %c0_i32, %arg1 : i32, i32
  }
  func.func @transform_8(%arg0: i32, %arg1: i32) -> (i32, i32) {
    %c0_i32 = arith.constant 0 : i32
    %c0_i32_0 = arith.constant 0 : i32
    return %c0_i32, %arg1 : i32, i32
  }
  func.func @transform_9(%arg0: i32, %arg1: i32) -> (i32, i32) {
    %c0_i32 = arith.constant 0 : i32
    return %arg0, %arg1 : i32, i32
  }
}

</mosaic_0001>

<llo_original>
// kernel: tpu_custom_call.1
$region0: #{tpu_custom_call.1}
  #allocation0 [shape = 'u32[]', space=smem, size = 0x4, offset = 0x4, fixed_abs, tag = 'smem constant byte address 0x4 - core index']
  #allocation1 [shape = 'u32[144,128]{1,0:T(1,128)}', space=vmem, size = 0x12000, scoped, tag = 'internal scratch']
  %s0 = inlined_call_operand.hbm [shape: f32[2,32], index: 0, kind: input, shape index: {}]
  %s1 = inlined_call_operand.vmem [shape: f32[2,96], index: 1, kind: input, shape index: {}]
  %s2 = inlined_call_operand.vmem [shape: f32[2,32], index: 2, kind: input, shape index: {}]
  %s3 = inlined_call_operand.vmem [shape: f32[2,32], index: 3, kind: input, shape index: {}]
  %s4 = inlined_call_operand.hbm [shape: f32[32,128], index: 4, kind: input, shape index: {}]
  %s5 = inlined_call_operand.hbm [shape: f32[96,128], index: 5, kind: input, shape index: {}]
  %s6 = inlined_call_operand.hbm [shape: f32[32,128], index: 6, kind: input, shape index: {}]
  %s7 = inlined_call_operand.hbm [shape: f32[32,128], index: 7, kind: input, shape index: {}]
  %s8 = inlined_call_operand.vmem [shape: f32[1,128], index: 8, kind: input, shape index: {}]
  %s9 = inlined_call_operand.hbm [shape: f32[2,128], index: 9, kind: output, shape index: {}]
  %s10 = sld [smem:[#allocation0]]
  $region66: #{tpu_custom_call.1} parent=0
    _
  %s12 = ssub.s32 1, %s10
  %s13 = scalar_select 0, %s12, %s10
  $region1: #{tpu_custom_call.1} parent=0
    #allocation2 [shape = 'u8[1024]{0}', space=vmem, size = 0x400, scoped, tag = 'input window, operand 0, single buffered']
    #allocation3 [shape = 's32[1]{0}', space=sflag, size = 0x4, scoped, tag = 'scoped memory for tpu_custom_call.1']
    #allocation4 [shape = 's32[1]{0}', space=sflag, size = 0x4, scoped, tag = 'scoped memory for tpu_custom_call.1']
    #allocation5 [shape = 'u8[16384]{0}', space=vmem, size = 0x4000, scoped, tag = 'input window, operand 4, single buffered']
    #allocation6 [shape = 's32[1]{0}', space=sflag, size = 0x4, scoped, tag = 'scoped memory for tpu_custom_call.1']
    #allocation7 [shape = 'u8[49152]{0}', space=vmem, size = 0xc000, scoped, tag = 'input window, operand 5, single buffered']
    #allocation8 [shape = 'u8[16384]{0}', space=vmem, size = 0x4000, scoped, tag = 'input window, operand 6, single buffered']
    #allocation9 [shape = 's32[1]{0}', space=sflag, size = 0x4, scoped, tag = 'scoped memory for tpu_custom_call.1']
    #allocation10 [shape = 'u8[16384]{0}', space=vmem, size = 0x4000, scoped, tag = 'input window, operand 7, single buffered']
    #allocation11 [shape = 'u8[1024]{0}', space=vmem, size = 0x400, scoped, tag = 'output window, operand 0, single buffered']
    %14 = vsyncpa [#allocation3], 0
    %15 = vsyncpa [#allocation6], 0
    %16 = vsyncpa [#allocation9], 0
    %17 = vsyncpa [#allocation4], 0
    // Predicated region
    $region2: #{tpu_custom_call.1} parent=1 // pred_check
      _
    $region3: #{tpu_custom_call.1} parent=1 // pred_check_branch
      %19 = sbr.rel (0) target = $region5
    $region4: #{tpu_custom_call.1} parent=1 // pred_region
      %s21 = ssub.s32 32, 32
      %22 = vsyncadd [#allocation3], %s21
      %s24 = sshll.u32 [#allocation2], 4
      %s25 = int_to_ptr.vmem [resolvable:$true] %s24
      %27 = dma.hbm_to_vmem [thread:$0]  %s0, 32, %s25, [#allocation3]
    $region5: #{tpu_custom_call.1} parent=1 // pred_fallthru
      _
    // Predicated region
    $region6: #{tpu_custom_call.1} parent=1 // pred_check
      _
    $region7: #{tpu_custom_call.1} parent=1 // pred_check_branch
      %29 = sbr.rel (0) target = $region9
    $region8: #{tpu_custom_call.1} parent=1 // pred_region
      _
    $region9: #{tpu_custom_call.1} parent=1 // pred_fallthru
      _
    // Predicated region
    $region10: #{tpu_custom_call.1} parent=1 // pred_check
      _
    $region11: #{tpu_custom_call.1} parent=1 // pred_check_branch
      %31 = sbr.rel (0) target = $region13
    $region12: #{tpu_custom_call.1} parent=1 // pred_region
      _
    $region13: #{tpu_custom_call.1} parent=1 // pred_fallthru
      _
    // Predicated region
    $region14: #{tpu_custom_call.1} parent=1 // pred_check
      _
    $region15: #{tpu_custom_call.1} parent=1 // pred_check_branch
      %33 = sbr.rel (0) target = $region17
    $region16: #{tpu_custom_call.1} parent=1 // pred_region
      _
    $region17: #{tpu_custom_call.1} parent=1 // pred_fallthru
      _
    // Predicated region
    $region18: #{tpu_custom_call.1} parent=1 // pred_check
      _
    $region19: #{tpu_custom_call.1} parent=1 // pred_check_branch
      %35 = sbr.rel (0) target = $region21
    $region20: #{tpu_custom_call.1} parent=1 // pred_region
      %s37 = ssub.s32 512, 512
      %38 = vsyncadd [#allocation6], %s37
      %s39 = sshll.u32 [#allocation5], 4
      %s40 = int_to_ptr.vmem [resolvable:$true] %s39
      %45 = dma.hbm_to_vmem [thread:$0]  %s4, 512, %s40, [#allocation6], 128, 128, 8
    $region21: #{tpu_custom_call.1} parent=1 // pred_fallthru
      _
    // Predicated region
    $region22: #{tpu_custom_call.1} parent=1 // pred_check
      _
    $region23: #{tpu_custom_call.1} parent=1 // pred_check_branch
      %47 = sbr.rel (0) target = $region25
    $region24: #{tpu_custom_call.1} parent=1 // pred_region
      %s49 = ssub.s32 1536, 1536
      %50 = vsyncadd [#allocation6], %s49
      %s51 = sshll.u32 [#allocation7], 4
      %s52 = int_to_ptr.vmem [resolvable:$true] %s51
      %57 = dma.hbm_to_vmem [thread:$0]  %s5, 1536, %s52, [#allocation6], 128, 128, 8
    $region25: #{tpu_custom_call.1} parent=1 // pred_fallthru
      _
    // Predicated region
    $region26: #{tpu_custom_call.1} parent=1 // pred_check
      _
    $region27: #{tpu_custom_call.1} parent=1 // pred_check_branch
      %59 = sbr.rel (0) target = $region29
    $region28: #{tpu_custom_call.1} parent=1 // pred_region
      %s61 = ssub.s32 512, 512
      %62 = vsyncadd [#allocation9], %s61
      %s63 = sshll.u32 [#allocation8], 4
      %s64 = int_to_ptr.vmem [resolvable:$true] %s63
      %69 = dma.hbm_to_vmem [thread:$0]  %s6, 512, %s64, [#allocation9], 128, 128, 8
    $region29: #{tpu_custom_call.1} parent=1 // pred_fallthru
      _
    // Predicated region
    $region30: #{tpu_custom_call.1} parent=1 // pred_check
      _
    $region31: #{tpu_custom_call.1} parent=1 // pred_check_branch
      %71 = sbr.rel (0) target = $region33
    $region32: #{tpu_custom_call.1} parent=1 // pred_region
      %s73 = ssub.s32 512, 512
      %74 = vsyncadd [#allocation9], %s73
      %s75 = sshll.u32 [#allocation10], 4
      %s76 = int_to_ptr.vmem [resolvable:$true] %s75
      %81 = dma.hbm_to_vmem [thread:$0]  %s7, 512, %s76, [#allocation9], 128, 128, 8
    $region33: #{tpu_custom_call.1} parent=1 // pred_fallthru
      _
    // Predicated region
    $region34: #{tpu_custom_call.1} parent=1 // pred_check
      _
    $region35: #{tpu_custom_call.1} parent=1 // pred_check_branch
      %83 = sbr.rel (0) target = $region37
    $region36: #{tpu_custom_call.1} parent=1 // pred_region
      _
    $region37: #{tpu_custom_call.1} parent=1 // pred_fallthru
      _
    // Predicated region
    $region38: #{tpu_custom_call.1} parent=1 // pred_check
      _
    $region39: #{tpu_custom_call.1} parent=1 // pred_check_branch
      %85 = sbr.rel (0) target = $region41
    $region40: #{tpu_custom_call.1} parent=1 // pred_region
      %86 = dma.done [#allocation3], 32
    $region41: #{tpu_custom_call.1} parent=1 // pred_fallthru
      _
    // Predicated region
    $region42: #{tpu_custom_call.1} parent=1 // pred_check
      _
    $region43: #{tpu_custom_call.1} parent=1 // pred_check_branch
      %88 = sbr.rel (0) target = $region45
    $region44: #{tpu_custom_call.1} parent=1 // pred_region
      %89 = dma.done [#allocation6], 512
    $region45: #{tpu_custom_call.1} parent=1 // pred_fallthru
      _
    // Predicated region
    $region46: #{tpu_custom_call.1} parent=1 // pred_check
      _
    $region47: #{tpu_custom_call.1} parent=1 // pred_check_branch
      %91 = sbr.rel (0) target = $region49
    $region48: #{tpu_custom_call.1} parent=1 // pred_region
      %92 = dma.done [#allocation6], 1536
    $region49: #{tpu_custom_call.1} parent=1 // pred_fallthru
      _
    // Predicated region
    $region50: #{tpu_custom_call.1} parent=1 // pred_check
      _
    $region51: #{tpu_custom_call.1} parent=1 // pred_check_branch
      %94 = sbr.rel (0) target = $region53
    $region52: #{tpu_custom_call.1} parent=1 // pred_region
      %95 = dma.done [#allocation9], 512
    $region53: #{tpu_custom_call.1} parent=1 // pred_fallthru
      _
    // Predicated region
    $region54: #{tpu_custom_call.1} parent=1 // pred_check
      _
    $region55: #{tpu_custom_call.1} parent=1 // pred_check_branch
      %97 = sbr.rel (0) target = $region57
    $region56: #{tpu_custom_call.1} parent=1 // pred_region
      %98 = dma.done [#allocation9], 512
    $region57: #{tpu_custom_call.1} parent=1 // pred_fallthru
      _
    %v99 = vld [vmem:[#allocation2] sm:$0x3]
    %v100 = vld [vmem:[#allocation5] sm:$0xff]
    %v101 = vld [vmem:[#allocation5 + $0x8] sm:$0xff]
    %v102 = vld [vmem:[#allocation5 + $0x10] sm:$0xff]
    %v103 = vld [vmem:[#allocation5 + $0x18] sm:$0xff]
    %v104 = vld [vmem:[%s1] sm:$0x3]
    %v105 = vld [vmem:[#allocation7] sm:$0xff]
    %v106 = vld [vmem:[#allocation7 + $0x8] sm:$0xff]
    %v107 = vld [vmem:[#allocation7 + $0x10] sm:$0xff]
    %v108 = vld [vmem:[#allocation7 + $0x18] sm:$0xff]
    %v109 = vld [vmem:[#allocation7 + $0x20] sm:$0xff]
    %v110 = vld [vmem:[#allocation7 + $0x28] sm:$0xff]
    %v111 = vld [vmem:[#allocation7 + $0x30] sm:$0xff]
    %v112 = vld [vmem:[#allocation7 + $0x38] sm:$0xff]
    %v113 = vld [vmem:[#allocation7 + $0x40] sm:$0xff]
    %v114 = vld [vmem:[#allocation7 + $0x48] sm:$0xff]
    %v115 = vld [vmem:[#allocation7 + $0x50] sm:$0xff]
    %v116 = vld [vmem:[#allocation7 + $0x58] sm:$0xff]
    %vm117 = vcmask 785408
    %v119 = vsel %vm117, %v104, 0
    %121 = vmatprep.subr.mxu0 0.0
    %122 = vmatpush1.msra.mxu0 %v105
    %123 = vmatprep.subr.mxu0 0.0
    %124 = vmatpush1.msra.mxu0 %v106
    %125 = vmatprep.subr.mxu0 0.0
    %126 = vmatpush1.msra.mxu0 %v107
    %127 = vmatprep.subr.mxu0 0.0
    %128 = vmatpush1.msra.mxu0 %v108
    %129 = vmatprep.subr.mxu0 0.0
    %130 = vmatpush1.msra.mxu0 %v109
    %131 = vmatprep.subr.mxu0 0.0
    %132 = vmatpush1.msra.mxu0 %v110
    %133 = vmatprep.subr.mxu0 0.0
    %134 = vmatpush1.msra.mxu0 %v111
    %135 = vmatprep.subr.mxu0 0.0
    %136 = vmatpush1.msra.mxu0 %v112
    %137 = vmatprep.subr.mxu0 0.0
    %138 = vmatpush1.msra.mxu0 %v113
    %139 = vmatprep.subr.mxu0 0.0
    %140 = vmatpush1.msra.mxu0 %v114
    %141 = vmatprep.subr.mxu0 0.0
    %142 = vmatpush1.msra.mxu0 %v115
    %143 = vmatprep.subr.mxu0 0.0
    %144 = vmatpush1.msra.mxu0 %v116
    %145 = vmatprep.subr.mxu0 0.0
    %146 = vmatpush1.msra.mxu0 0.0
    %147 = vmatprep.subr.mxu0 0.0
    %148 = vmatpush1.msra.mxu0 0.0
    %149 = vmatprep.subr.mxu0 0.0
    %150 = vmatpush1.msra.mxu0 0.0
    %151 = vmatprep.subr.mxu0 0.0
    %152 = vmatpush1.msra.mxu0 0.0
    %153 = vmatprep.subr.mxu0 0.0
    %154 = vmatpush1.msra.mxu0 0.0
    %155 = vmatprep.subr.mxu0 0.0
    %156 = vmatpush1.msra.mxu0 0.0
    %157 = vmatprep.subr.mxu0 0.0
    %158 = vmatpush1.msra.mxu0 0.0
    %159 = vmatprep.subr.mxu0 0.0
    %160 = vmatpush1.msra.mxu0 0.0
    %161 = vmatprep.subr.mxu0 0.0
    %162 = vmatpush1.msra.mxu0 0.0
    %163 = vmatprep.subr.mxu0 0.0
    %164 = vmatpush1.msra.mxu0 0.0
    %165 = vmatprep.subr.mxu0 0.0
    %166 = vmatpush1.msra.mxu0 0.0
    %167 = vmatprep.subr.mxu0 0.0
    %168 = vmatpush1.msra.mxu0 0.0
    %169 = vmatprep.subr.mxu0 0.0
    %170 = vmatpush1.msra.mxu0 0.0
    %171 = vmatprep.subr.mxu0 0.0
    %172 = vmatpush1.msra.mxu0 0.0
    %173 = vmatprep.subr.mxu0 0.0
    %174 = vmatpush1.msra.mxu0 0.0
    %175 = vmatprep.subr.mxu0 0.0
    %176 = vmatpush1.msra.mxu0 0.0
    %177 = vmatprep.subr.mxu0 0.0
    %178 = vmatpush1.msra.mxu0 0.0
    %179 = vmatprep.subr.mxu0 0.0
    %180 = vmatpush1.msra.mxu0 0.0
    %181 = vmatprep.subr.mxu0 0.0
    %182 = vmatpush1.msra.mxu0 0.0
    %183 = vmatprep.subr.mxu0 0.0
    %184 = vmatpush1.msra.mxu0 0.0
    %185 = vmatprep.mubr.f32.mxu0 0.0
    %186 = vmatmul.mubr.f32.gmra.mrb[0].mxu0 %v119
    %v187 = vpop.f32.mrb[0].mxu0
    %v188 = vadd.f32 0.0, %v187
    %v189 = vpop.f32.mrb[0].mxu0
    %190 = vdwg.mxu0
    %vm191 = vcmask 261120
    %v193 = vsel %vm191, %v99, 0
    %195 = vmatprep.subr.mxu0 0.0
    %196 = vmatpush1.msra.mxu0 %v100
    %197 = vmatprep.subr.mxu0 0.0
    %198 = vmatpush1.msra.mxu0 %v101
    %199 = vmatprep.subr.mxu0 0.0
    %200 = vmatpush1.msra.mxu0 %v102
    %201 = vmatprep.subr.mxu0 0.0
    %202 = vmatpush1.msra.mxu0 %v103
    %203 = vmatprep.subr.mxu0 0.0
    %204 = vmatpush1.msra.mxu0 0.0
    %205 = vmatprep.subr.mxu0 0.0
    %206 = vmatpush1.msra.mxu0 0.0
    %207 = vmatprep.subr.mxu0 0.0
    %208 = vmatpush1.msra.mxu0 0.0
    %209 = vmatprep.subr.mxu0 0.0
    %210 = vmatpush1.msra.mxu0 0.0
    %211 = vmatprep.subr.mxu0 0.0
    %212 = vmatpush1.msra.mxu0 0.0
    %213 = vmatprep.subr.mxu0 0.0
    %214 = vmatpush1.msra.mxu0 0.0
    %215 = vmatprep.subr.mxu0 0.0
    %216 = vmatpush1.msra.mxu0 0.0
    %217 = vmatprep.subr.mxu0 0.0
    %218 = vmatpush1.msra.mxu0 0.0
    %219 = vmatprep.subr.mxu0 0.0
    %220 = vmatpush1.msra.mxu0 0.0
    %221 = vmatprep.subr.mxu0 0.0
    %222 = vmatpush1.msra.mxu0 0.0
    %223 = vmatprep.subr.mxu0 0.0
    %224 = vmatpush1.msra.mxu0 0.0
    %225 = vmatprep.subr.mxu0 0.0
    %226 = vmatpush1.msra.mxu0 0.0
    %227 = vmatprep.subr.mxu0 0.0
    %228 = vmatpush1.msra.mxu0 0.0
    %229 = vmatprep.subr.mxu0 0.0
    %230 = vmatpush1.msra.mxu0 0.0
    %231 = vmatprep.subr.mxu0 0.0
    %232 = vmatpush1.msra.mxu0 0.0
    %233 = vmatprep.subr.mxu0 0.0
    %234 = vmatpush1.msra.mxu0 0.0
    %235 = vmatprep.subr.mxu0 0.0
    %236 = vmatpush1.msra.mxu0 0.0
    %237 = vmatprep.subr.mxu0 0.0
    %238 = vmatpush1.msra.mxu0 0.0
    %239 = vmatprep.subr.mxu0 0.0
    %240 = vmatpush1.msra.mxu0 0.0
    %241 = vmatprep.subr.mxu0 0.0
    %242 = vmatpush1.msra.mxu0 0.0
    %243 = vmatprep.subr.mxu0 0.0
    %244 = vmatpush1.msra.mxu0 0.0
    %245 = vmatprep.subr.mxu0 0.0
    %246 = vmatpush1.msra.mxu0 0.0
    %247 = vmatprep.subr.mxu0 0.0
    %248 = vmatpush1.msra.mxu0 0.0
    %249 = vmatprep.subr.mxu0 0.0
    %250 = vmatpush1.msra.mxu0 0.0
    %251 = vmatprep.subr.mxu0 0.0
    %252 = vmatpush1.msra.mxu0 0.0
    %253 = vmatprep.subr.mxu0 0.0
    %254 = vmatpush1.msra.mxu0 0.0
    %255 = vmatprep.subr.mxu0 0.0
    %256 = vmatpush1.msra.mxu0 0.0
    %257 = vmatprep.subr.mxu0 0.0
    %258 = vmatpush1.msra.mxu0 0.0
    %259 = vmatprep.mubr.f32.mxu0 0.0
    %260 = vmatmul.mubr.f32.gmra.mrb[0].mxu0 %v193
    %v261 = vpop.f32.mrb[0].mxu0
    %v262 = vadd.f32 %v188, %v261
    %v263 = vpop.f32.mrb[0].mxu0
    %264 = vdwg.mxu0
    %v265 = vld [vmem:[%s2] sm:$0x3]
    %v266 = vld [vmem:[#allocation8] sm:$0xff]
    %v267 = vld [vmem:[#allocation8 + $0x8] sm:$0xff]
    %v268 = vld [vmem:[#allocation8 + $0x10] sm:$0xff]
    %v269 = vld [vmem:[#allocation8 + $0x18] sm:$0xff]
    %v271 = vsel %vm191, %v265, 0
    %273 = vmatprep.subr.mxu0 0.0
    %274 = vmatpush1.msra.mxu0 %v266
    %275 = vmatprep.subr.mxu0 0.0
    %276 = vmatpush1.msra.mxu0 %v267
    %277 = vmatprep.subr.mxu0 0.0
    %278 = vmatpush1.msra.mxu0 %v268
    %279 = vmatprep.subr.mxu0 0.0
    %280 = vmatpush1.msra.mxu0 %v269
    %281 = vmatprep.subr.mxu0 0.0
    %282 = vmatpush1.msra.mxu0 0.0
    %283 = vmatprep.subr.mxu0 0.0
    %284 = vmatpush1.msra.mxu0 0.0
    %285 = vmatprep.subr.mxu0 0.0
    %286 = vmatpush1.msra.mxu0 0.0
    %287 = vmatprep.subr.mxu0 0.0
    %288 = vmatpush1.msra.mxu0 0.0
    %289 = vmatprep.subr.mxu0 0.0
    %290 = vmatpush1.msra.mxu0 0.0
    %291 = vmatprep.subr.mxu0 0.0
    %292 = vmatpush1.msra.mxu0 0.0
    %293 = vmatprep.subr.mxu0 0.0
    %294 = vmatpush1.msra.mxu0 0.0
    %295 = vmatprep.subr.mxu0 0.0
    %296 = vmatpush1.msra.mxu0 0.0
    %297 = vmatprep.subr.mxu0 0.0
    %298 = vmatpush1.msra.mxu0 0.0
    %299 = vmatprep.subr.mxu0 0.0
    %300 = vmatpush1.msra.mxu0 0.0
    %301 = vmatprep.subr.mxu0 0.0
    %302 = vmatpush1.msra.mxu0 0.0
    %303 = vmatprep.subr.mxu0 0.0
    %304 = vmatpush1.msra.mxu0 0.0
    %305 = vmatprep.subr.mxu0 0.0
    %306 = vmatpush1.msra.mxu0 0.0
    %307 = vmatprep.subr.mxu0 0.0
    %308 = vmatpush1.msra.mxu0 0.0
    %309 = vmatprep.subr.mxu0 0.0
    %310 = vmatpush1.msra.mxu0 0.0
    %311 = vmatprep.subr.mxu0 0.0
    %312 = vmatpush1.msra.mxu0 0.0
    %313 = vmatprep.subr.mxu0 0.0
    %314 = vmatpush1.msra.mxu0 0.0
    %315 = vmatprep.subr.mxu0 0.0
    %316 = vmatpush1.msra.mxu0 0.0
    %317 = vmatprep.subr.mxu0 0.0
    %318 = vmatpush1.msra.mxu0 0.0
    %319 = vmatprep.subr.mxu0 0.0
    %320 = vmatpush1.msra.mxu0 0.0
    %321 = vmatprep.subr.mxu0 0.0
    %322 = vmatpush1.msra.mxu0 0.0
    %323 = vmatprep.subr.mxu0 0.0
    %324 = vmatpush1.msra.mxu0 0.0
    %325 = vmatprep.subr.mxu0 0.0
    %326 = vmatpush1.msra.mxu0 0.0
    %327 = vmatprep.subr.mxu0 0.0
    %328 = vmatpush1.msra.mxu0 0.0
    %329 = vmatprep.subr.mxu0 0.0
    %330 = vmatpush1.msra.mxu0 0.0
    %331 = vmatprep.subr.mxu0 0.0
    %332 = vmatpush1.msra.mxu0 0.0
    %333 = vmatprep.subr.mxu0 0.0
    %334 = vmatpush1.msra.mxu0 0.0
    %335 = vmatprep.subr.mxu0 0.0
    %336 = vmatpush1.msra.mxu0 0.0
    %337 = vmatprep.mubr.f32.mxu0 0.0
    %338 = vmatmul.mubr.f32.gmra.mrb[0].mxu0 %v271
    %v339 = vpop.f32.mrb[0].mxu0
    %v340 = vadd.f32 0.0, %v339
    %v341 = vpop.f32.mrb[0].mxu0
    %342 = vdwg.mxu0
    %v343 = vadd.f32 %v262, %v340
    %v344 = vld [vmem:[%s3] sm:$0x3]
    %v345 = vld [vmem:[#allocation10] sm:$0xff]
    %v346 = vld [vmem:[#allocation10 + $0x8] sm:$0xff]
    %v347 = vld [vmem:[#allocation10 + $0x10] sm:$0xff]
    %v348 = vld [vmem:[#allocation10 + $0x18] sm:$0xff]
    %v350 = vsel %vm191, %v344, 0
    %352 = vmatprep.subr.mxu0 0.0
    %353 = vmatpush1.msra.mxu0 %v345
    %354 = vmatprep.subr.mxu0 0.0
    %355 = vmatpush1.msra.mxu0 %v346
    %356 = vmatprep.subr.mxu0 0.0
    %357 = vmatpush1.msra.mxu0 %v347
    %358 = vmatprep.subr.mxu0 0.0
    %359 = vmatpush1.msra.mxu0 %v348
    %360 = vmatprep.subr.mxu0 0.0
    %361 = vmatpush1.msra.mxu0 0.0
    %362 = vmatprep.subr.mxu0 0.0
    %363 = vmatpush1.msra.mxu0 0.0
    %364 = vmatprep.subr.mxu0 0.0
    %365 = vmatpush1.msra.mxu0 0.0
    %366 = vmatprep.subr.mxu0 0.0
    %367 = vmatpush1.msra.mxu0 0.0
    %368 = vmatprep.subr.mxu0 0.0
    %369 = vmatpush1.msra.mxu0 0.0
    %370 = vmatprep.subr.mxu0 0.0
    %371 = vmatpush1.msra.mxu0 0.0
    %372 = vmatprep.subr.mxu0 0.0
    %373 = vmatpush1.msra.mxu0 0.0
    %374 = vmatprep.subr.mxu0 0.0
    %375 = vmatpush1.msra.mxu0 0.0
    %376 = vmatprep.subr.mxu0 0.0
    %377 = vmatpush1.msra.mxu0 0.0
    %378 = vmatprep.subr.mxu0 0.0
    %379 = vmatpush1.msra.mxu0 0.0
    %380 = vmatprep.subr.mxu0 0.0
    %381 = vmatpush1.msra.mxu0 0.0
    %382 = vmatprep.subr.mxu0 0.0
    %383 = vmatpush1.msra.mxu0 0.0
    %384 = vmatprep.subr.mxu0 0.0
    %385 = vmatpush1.msra.mxu0 0.0
    %386 = vmatprep.subr.mxu0 0.0
    %387 = vmatpush1.msra.mxu0 0.0
    %388 = vmatprep.subr.mxu0 0.0
    %389 = vmatpush1.msra.mxu0 0.0
    %390 = vmatprep.subr.mxu0 0.0
    %391 = vmatpush1.msra.mxu0 0.0
    %392 = vmatprep.subr.mxu0 0.0
    %393 = vmatpush1.msra.mxu0 0.0
    %394 = vmatprep.subr.mxu0 0.0
    %395 = vmatpush1.msra.mxu0 0.0
    %396 = vmatprep.subr.mxu0 0.0
    %397 = vmatpush1.msra.mxu0 0.0
    %398 = vmatprep.subr.mxu0 0.0
    %399 = vmatpush1.msra.mxu0 0.0
    %400 = vmatprep.subr.mxu0 0.0
    %401 = vmatpush1.msra.mxu0 0.0
    %402 = vmatprep.subr.mxu0 0.0
    %403 = vmatpush1.msra.mxu0 0.0
    %404 = vmatprep.subr.mxu0 0.0
    %405 = vmatpush1.msra.mxu0 0.0
    %406 = vmatprep.subr.mxu0 0.0
    %407 = vmatpush1.msra.mxu0 0.0
    %408 = vmatprep.subr.mxu0 0.0
    %409 = vmatpush1.msra.mxu0 0.0
    %410 = vmatprep.subr.mxu0 0.0
    %411 = vmatpush1.msra.mxu0 0.0
    %412 = vmatprep.subr.mxu0 0.0
    %413 = vmatpush1.msra.mxu0 0.0
    %414 = vmatprep.subr.mxu0 0.0
    %415 = vmatpush1.msra.mxu0 0.0
    %416 = vmatprep.mubr.f32.mxu0 0.0
    %417 = vmatmul.mubr.f32.gmra.mrb[0].mxu0 %v350
    %v418 = vpop.f32.mrb[0].mxu0
    %v419 = vadd.f32 0.0, %v418
    %v420 = vpop.f32.mrb[0].mxu0
    %421 = vdwg.mxu0
    %v422 = vadd.f32 %v343, %v419
    %v423 = vld [vmem:[%s8] sm:$0x1]
    %v425 = vlaneseq
    %v426 = vshrl.u32 %v425, 7
    %v427 = vsub.s32 0, %v426
    %v428 = vrot.slane %v423, %v427
    %v430 = vadd.f32 %v422, %v428
    %v431 = vxor.u32 %v430, 2147483648
    %v432 = vmul.f32 %v431, 1.442695
    %v433 = vpow.pop %v432
    %v434 = vadd.f32 %v433, 1.0
    %v435 = vrcp.pop %v434
    %v436 = vmul.f32 1.0, %v435
    %437 = vst [vmem:[#allocation11] sm:$0x3] %v436
    // Predicated region
    $region58: #{tpu_custom_call.1} parent=1 // pred_check
      _
    $region59: #{tpu_custom_call.1} parent=1 // pred_check_branch
      %439 = sbr.rel (0) target = $region61
    $region60: #{tpu_custom_call.1} parent=1 // pred_region
      %s441 = ssub.s32 32, 32
      %442 = vsyncadd [#allocation4], %s441
      %s444 = sshll.u32 [#allocation11], 4
      %s445 = int_to_ptr.vmem [resolvable:$true] %s444
      %447 = dma.vmem_to_hbm [thread:$0]  %s445, 32, %s9, [#allocation4]
    $region61: #{tpu_custom_call.1} parent=1 // pred_fallthru
      _
    // Predicated region
    $region62: #{tpu_custom_call.1} parent=1 // pred_check
      _
    $region63: #{tpu_custom_call.1} parent=1 // pred_check_branch
      %449 = sbr.rel (0) target = $region65
    $region64: #{tpu_custom_call.1} parent=1 // pred_region
      %450 = dma.done [#allocation4], 32
    $region65: #{tpu_custom_call.1} parent=1 // pred_fallthru
      _
    %451 = vsyncpa [#allocation3], 1
    %452 = vsyncpa [#allocation6], 1
    %453 = vsyncpa [#allocation9], 1
    %454 = vsyncpa [#allocation4], 1

</llo_original>
